<compile_context>
chip_gen: v5e
topology: v5e:2x2
jax: 0.10.0
libtpu: 0.0.40
codegen_flags: <defaults>
</compile_context>

<pallas_src>
import jax
import jax.numpy as jnp
from jax.experimental import pallas as pl
from jax.experimental.pallas import tpu as pltpu

_TARGET_CHUNK_BYTES = 8 * 1024 * 1024   # aim for ~8 MiB per DMA
_MAX_INFLIGHT = 4                       # at most 4 DMAs in flight


def _chunk_bounds(dim0: int, n_chunks: int):
    """Split [0, dim0) into n_chunks static (start, size) spans."""
    base = dim0 // n_chunks
    rem = dim0 % n_chunks
    bounds = []
    start = 0
    for i in range(n_chunks):
        size = base + (1 if i < rem else 0)
        if size > 0:
            bounds.append((start, size))
        start += size
    return bounds


def _make_copy_kernel(chunks):
    """HBM->HBM copy kernel: issue all chunk DMAs, then wait on all of them."""

    def kernel(x_hbm, o_hbm, sems):
        # Start every chunk DMA (a few in flight keeps HBM saturated).
        for i, (start, size) in enumerate(chunks):
            pltpu.make_async_copy(
                x_hbm.at[pl.ds(start, size)],
                o_hbm.at[pl.ds(start, size)],
                sems.at[i],
            ).start()
        # Wait for completion of each chunk.
        for i, (start, size) in enumerate(chunks):
            pltpu.make_async_copy(
                x_hbm.at[pl.ds(start, size)],
                o_hbm.at[pl.ds(start, size)],
                sems.at[i],
            ).wait()

    return kernel


def pallas_hbm_copy(x: jax.Array) -> jax.Array:
    """Copy x (any shape/dtype) via direct HBM->HBM DMAs inside a Pallas
    kernel.  No VMEM staging, no host-side padding/slicing."""
    if x.size == 0:
        # Nothing to move; a zero-sized DMA/block would be rejected.
        return x

    nbytes = x.size * jnp.dtype(x.dtype).itemsize
    dim0 = x.shape[0] if x.ndim >= 1 else 1
    x_in = x if x.ndim >= 1 else x.reshape(1)

    # Number of chunks: enough to overlap DMA issue latency on big arrays,
    # but never more than the leading dim allows; tiny arrays get one DMA.
    n_chunks = max(1, min(_MAX_INFLIGHT, dim0, nbytes // _TARGET_CHUNK_BYTES))
    chunks = _chunk_bounds(dim0, n_chunks)

    out = pl.pallas_call(
        _make_copy_kernel(chunks),
        out_shape=jax.ShapeDtypeStruct(x_in.shape, x_in.dtype),
        in_specs=[pl.BlockSpec(memory_space=pl.ANY)],
        out_specs=pl.BlockSpec(memory_space=pl.ANY),
        scratch_shapes=[pltpu.SemaphoreType.DMA((len(chunks),))],
        cost_estimate=pl.CostEstimate(
            flops=0, transcendentals=0, bytes_accessed=2 * nbytes
        ),
    )(x_in)

    return out if x.ndim >= 1 else out.reshape(x.shape)


def cnn_forward(x: jax.Array, *, exercise_kernel: bool = False):
    """Matches CNN.forward semantics exactly: the PyTorch forward body is
    `pass`, so it returns None.  The (discarded) Pallas copy is elided by
    default; set exercise_kernel=True to force the TPU kernel path (safe
    under tracing: no host-side blocking inside)."""
    if exercise_kernel:
        _ = pallas_hbm_copy(x)
    return None


if __name__ == "__main__":
    key = jax.random.PRNGKey(0)
    # Small NCHW input consistent with a CNN-style module: batch=2, channels=4,
    # spatial 16x16.
    x = jax.random.normal(key, (2, 4, 16, 16), dtype=jnp.float32)

    # Small-input path: single HBM->HBM DMA, no padding/slicing.
    y = jax.block_until_ready(pallas_hbm_copy(x))
    assert y.shape == x.shape and y.dtype == x.dtype
    assert bool(jnp.allclose(y, x))

    # Ragged input (element count not a multiple of 128): native-shape DMA,
    # no host-side padding needed.
    x_odd = jax.random.normal(jax.random.PRNGKey(1), (2, 3, 15, 15), dtype=jnp.float32)
    y_odd = jax.block_until_ready(pallas_hbm_copy(x_odd))
    assert y_odd.shape == x_odd.shape and y_odd.dtype == x_odd.dtype
    assert bool(jnp.allclose(y_odd, x_odd))

    # Larger input (32 MiB) exercises the multi-chunk, multiple-DMAs-in-flight
    # path (4 chunks of ~8 MiB each).
    x_big = jax.random.normal(jax.random.PRNGKey(2), (8, 16, 256, 256), dtype=jnp.float32)
    y_big = jax.block_until_ready(pallas_hbm_copy(x_big))
    assert bool(jnp.allclose(y_big, x_big))

    # Zero-element input is guarded (no zero-sized DMA/block).
    x_empty = jnp.zeros((0, 4), dtype=jnp.float32)
    y_empty = pallas_hbm_copy(x_empty)
    assert y_empty.shape == x_empty.shape

    # Semantics-exact forward (returns None, like the PyTorch module).
    result = cnn_forward(x)
    assert result is None
    result = cnn_forward(x, exercise_kernel=True)
    assert result is None

    print("KERNEL_OK")
</pallas_src>

<mosaic_0001>
module attributes {stable_mosaic.version = 11 : i64} {
  func.func @kernel(%arg0: memref<2x4x16x16xf32, #tpu.memory_space<any>>, %arg1: memref<2x4x16x16xf32, #tpu.memory_space<any>>, %arg2: memref<1x!tpu.dma_semaphore, #tpu.memory_space<semaphore_mem>>) attributes {dimension_semantics = [], scalar_prefetch = 0 : i64, scratch_operands = 1 : i64, tpu.core_type = #tpu.core_type<tc>} {
    %c0_i32 = arith.constant 0 : i32
    %c0_i32_0 = arith.constant 0 : i32
    %c0_i32_1 = arith.constant 0 : i32
    %c0_i32_2 = arith.constant 0 : i32
    %c0_i32_3 = arith.constant 0 : i32
    %0 = tpu.memref_slice %arg0[%c0_i32_0, %c0_i32_1, %c0_i32_2, %c0_i32_3] : memref<2x4x16x16xf32, #tpu.memory_space<any>> -> memref<2x4x16x16xf32, #tpu.memory_space<any>>
    %c0_i32_4 = arith.constant 0 : i32
    %c0_i32_5 = arith.constant 0 : i32
    %c0_i32_6 = arith.constant 0 : i32
    %c0_i32_7 = arith.constant 0 : i32
    %1 = tpu.memref_slice %arg1[%c0_i32_4, %c0_i32_5, %c0_i32_6, %c0_i32_7] : memref<2x4x16x16xf32, #tpu.memory_space<any>> -> memref<2x4x16x16xf32, #tpu.memory_space<any>>
    %2 = tpu.memref_slice %arg2[%c0_i32] : memref<1x!tpu.dma_semaphore, #tpu.memory_space<semaphore_mem>> -> memref<1x!tpu.dma_semaphore, #tpu.memory_space<semaphore_mem>>
    %3 = tpu.memref_squeeze %2 : memref<1x!tpu.dma_semaphore, #tpu.memory_space<semaphore_mem>> -> memref<!tpu.dma_semaphore, #tpu.memory_space<semaphore_mem>>
    tpu.enqueue_dma source(%0 : memref<2x4x16x16xf32, #tpu.memory_space<any>>) target(%1 : memref<2x4x16x16xf32, #tpu.memory_space<any>>) target_semaphore(%3 : memref<!tpu.dma_semaphore, #tpu.memory_space<semaphore_mem>>)
    %c0_i32_8 = arith.constant 0 : i32
    %c0_i32_9 = arith.constant 0 : i32
    %c0_i32_10 = arith.constant 0 : i32
    %c0_i32_11 = arith.constant 0 : i32
    %c0_i32_12 = arith.constant 0 : i32
    %4 = tpu.memref_slice %arg0[%c0_i32_9, %c0_i32_10, %c0_i32_11, %c0_i32_12] : memref<2x4x16x16xf32, #tpu.memory_space<any>> -> memref<2x4x16x16xf32, #tpu.memory_space<any>>
    %c0_i32_13 = arith.constant 0 : i32
    %c0_i32_14 = arith.constant 0 : i32
    %c0_i32_15 = arith.constant 0 : i32
    %c0_i32_16 = arith.constant 0 : i32
    %5 = tpu.memref_slice %arg1[%c0_i32_13, %c0_i32_14, %c0_i32_15, %c0_i32_16] : memref<2x4x16x16xf32, #tpu.memory_space<any>> -> memref<2x4x16x16xf32, #tpu.memory_space<any>>
    %6 = tpu.memref_slice %arg2[%c0_i32_8] : memref<1x!tpu.dma_semaphore, #tpu.memory_space<semaphore_mem>> -> memref<1x!tpu.dma_semaphore, #tpu.memory_space<semaphore_mem>>
    %7 = tpu.memref_squeeze %6 : memref<1x!tpu.dma_semaphore, #tpu.memory_space<semaphore_mem>> -> memref<!tpu.dma_semaphore, #tpu.memory_space<semaphore_mem>>
    tpu.wait_dma2 semaphore(%7 : memref<!tpu.dma_semaphore, #tpu.memory_space<semaphore_mem>>) src(%4 : memref<2x4x16x16xf32, #tpu.memory_space<any>>) dst(%5 : memref<2x4x16x16xf32, #tpu.memory_space<any>>)
    return
  }
}

</mosaic_0001>

<llo_original>
// kernel: tpu_custom_call.1
$region0: #{tpu_custom_call.1}
  #allocation0 [shape = 'u32[]', space=smem, size = 0x4, offset = 0x4, fixed_abs, tag = 'smem constant byte address 0x4 - core index']
  #allocation1 [shape = 'u32[72,128]{1,0:T(1,128)}', space=vmem, size = 0x9000, scoped, tag = 'internal scratch']
  #allocation2 [shape = 's32[1]{0}', space=sflag, size = 0x4, scoped, tag = 'scratch operand']
  #allocation3 [shape = 's32[]', space=sflag, size = 0x4, offset = 0, fixed_abs, tag = 'sflag constant byte address 0x0 - dummy sync flag']
  #allocation4 [shape = 'u32[0]{0}', space=smem, size = 0, offset = 0, fixed_abs, tag = 'smem constant byte address 0x0 - null']
  %s0 = inlined_call_operand.hbm [shape: f32[2,4,16,16], index: 0, kind: input, shape index: {}]
  %s1 = inlined_call_operand.hbm [shape: f32[2,4,16,16], index: 1, kind: output, shape index: {}]
  %s2 = sld [smem:[#allocation0]]
  $region2: #{tpu_custom_call.1} parent=0
    _
  %s4 = ssub.s32 1, %s2
  %s5 = scalar_select 0, %s4, %s2
  %s7 = sshll.u32 1, 14
  %s8 = sxor.u32 4294967295, %s7
  %s10 = sshll.u32 %s0, 4
  %s11 = int_to_ptr.hbm [resolvable:$true] %s10
  %s12 = sshll.u32 %s1, 4
  %s13 = int_to_ptr.hbm [resolvable:$true] %s12
  %16 = dma.general %s11, 2048, %s13, [#allocation2], [#allocation3], [#allocation4], 0, 0
  %s17 = smul.u32 2, 4
  %s18 = smul.u32 %s17, 16
  %s19 = smul.u32 %s18, 1
  %s20 = sshll.u32 %s19, 4
  %21 = dma.done [#allocation2], %s20
  %22 = vsyncmov [#allocation2]
  %s23 = vpop.sfrf %22
  %p24 = scmp.eq.s32.totalorder %s23, 0
  %p25 = pneg %p24
  %27 = shalt.err (%p25)

</llo_original>
